<compile_context>
chip_gen: v6e
topology: v6e:2x2x1
jax: 0.10.0
libtpu: 0.0.40
codegen_flags: <defaults>
</compile_context>

<pallas_src>
import jax
import jax.numpy as jnp
from jax.experimental import pallas as pl
from jax.experimental.pallas import tpu as pltpu


def _round_up(n, m):
    return ((n + m - 1) // m) * m


def _num_tensorcores():
    # Only v7x has 2 TensorCores per chip; on v5e/v6e the grid is a serial
    # loop, so manufacturing extra grid steps is pure overhead.
    try:
        kind = (getattr(jax.devices()[0], "device_kind", "") or "").lower()
        if "v7" in kind or "7x" in kind:
            return 2
    except Exception:
        pass
    return 1


def _vmem_capacity_bytes():
    try:
        return int(pltpu.get_tpu_info().vmem_capacity_bytes)
    except Exception:
        return 64 * 1024 * 1024   # conservative: v7x per-TC VMEM


def _autoencoder_kernel(x_ref,
                        w1_ref, b1_ref,
                        w2_ref, b2_ref,
                        w3_ref, b3_ref,
                        w4_ref, b4_ref,
                        o_ref):
    # Hoist bias reads (each ref read exactly once); elementwise math in f32
    # (v5e has no bf16 VPU; negligible cost on v6e/v7x for this shape).
    b1 = b1_ref[...].astype(jnp.float32)
    b2 = b2_ref[...].astype(jnp.float32)
    b3 = b3_ref[...].astype(jnp.float32)
    b4 = b4_ref[...].astype(jnp.float32)

    def lin_relu(h, w_ref, b):
        # bf16 operands into the MXU, f32 accumulation, f32 bias + ReLU.
        acc = jnp.dot(h.astype(w_ref.dtype), w_ref[...],
                      preferred_element_type=jnp.float32)
        return jnp.maximum(acc + b, 0.0)

    h = lin_relu(x_ref[...], w1_ref, b1)   # encoder_l1
    h = lin_relu(h, w2_ref, b2)            # encoder_l2 (latent)
    h = lin_relu(h, w3_ref, b3)            # decoder_l1
    h = lin_relu(h, w4_ref, b4)            # decoder_l2 (x_hat)

    o_ref[...] = h.astype(o_ref.dtype)


def _pad2d(a, rows, cols):
    r, c = a.shape
    if r == rows and c == cols:
        return a
    return jnp.pad(a, ((0, rows - r), (0, cols - c)))


def _choose_block_b(B, target, sub, num_tc):
    """Pick the batch tile: big, sublane-aligned, and dividing B if possible."""
    target = max(sub, _round_up(min(target, _round_up(B, sub)), sub))
    # v7x only: prefer >=2 grid steps, but never below 256 rows per TC.
    if num_tc >= 2 and B >= 512:
        per_core = _round_up(pl.cdiv(B, 2), 256)
        target = min(target, max(256, per_core))
    if B <= target:
        return target
    # Prefer a tile that divides B exactly (avoids wrapper-side pad/slice
    # copies of x and the output), but don't shrink below target/2 for it.
    lo = max(sub, (target // 2) // sub * sub)
    b = target
    while b >= lo:
        if B % b == 0:
            return b
        b -= sub
    return target


def autoencoder_forward(x, params, *, block_b=512,
                        compute_dtype=jnp.bfloat16,
                        out_dtype=jnp.float32):
    """x: (B, D_in). params: dict of transposed (in,out) f32 weights + biases."""
    B, D_in = x.shape
    L = params["w1"].shape[1]

    # Lane-dense feature dims (multiples of 128).
    D_pad = _round_up(max(D_in, 128), 128)
    L_pad = _round_up(max(L, 128), 128)

    # Batch tile: multiple of 16 (bf16 sublane packing) / 8 (f32).
    sub = 16 if jnp.dtype(compute_dtype).itemsize == 2 else 8
    block_b = _choose_block_b(B, block_b, sub, _num_tensorcores())
    B_pad = _round_up(B, block_b)
    grid = (B_pad // block_b,)

    # Pad + cast operands once in the wrapper.  Activations travel in the
    # compute dtype (halves x DMA bytes when bf16); biases stay f32.
    x_p = _pad2d(x.astype(compute_dtype), B_pad, D_pad)
    w1 = _pad2d(params["w1"], D_pad, L_pad).astype(compute_dtype)
    w2 = _pad2d(params["w2"], L_pad, L_pad).astype(compute_dtype)
    w3 = _pad2d(params["w3"], L_pad, L_pad).astype(compute_dtype)
    w4 = _pad2d(params["w4"], L_pad, D_pad).astype(compute_dtype)
    b1 = _pad2d(params["b1"], 1, L_pad).astype(jnp.float32)
    b2 = _pad2d(params["b2"], 1, L_pad).astype(jnp.float32)
    b3 = _pad2d(params["b3"], 1, L_pad).astype(jnp.float32)
    b4 = _pad2d(params["b4"], 1, D_pad).astype(jnp.float32)

    def const_spec(shape):
        # Constant index_map across the batch grid -> VMEM-resident weights,
        # single-buffered (no double allocation).
        # TODO(synk): verify in pl.lower_as_mlir that these blocks are DMA'd
        # once across the grid; fall back to pl.ANY + manual copy if re-fetched.
        return pl.BlockSpec(shape, lambda i: (0,) * len(shape),
                            pipeline_mode=pl.Buffered(1))

    c_isz = jnp.dtype(compute_dtype).itemsize
    o_isz = jnp.dtype(out_dtype).itemsize
    weight_bytes = sum(int(a.size) * a.dtype.itemsize
                       for a in (w1, w2, w3, w4, b1, b2, b3, b4))
    tile_bytes = 2 * block_b * D_pad * (c_isz + o_isz)        # dbl-buffered x / out
    interm_bytes = 3 * block_b * max(D_pad, L_pad) * 4        # f32 intermediates
    need = weight_bytes + tile_bytes + interm_bytes + (4 << 20)
    vmem_limit = int(min(max(need, 32 << 20), _vmem_capacity_bytes() * 7 // 8))
    # TODO(synk): for production shapes where resident weights exceed ~20-24 MiB
    # (v7x: 64 MiB VMEM per TC), add a K-tiled "arbitrary" grid axis with a
    # VMEM accumulator instead of keeping all four weights resident.

    flops = 2 * B_pad * (D_pad * L_pad + 2 * L_pad * L_pad + L_pad * D_pad)
    bytes_accessed = (int(x_p.size) * c_isz + B_pad * D_pad * o_isz + weight_bytes)
    cost = pl.CostEstimate(flops=flops, transcendentals=0,
                           bytes_accessed=bytes_accessed)

    out = pl.pallas_call(
        _autoencoder_kernel,
        out_shape=jax.ShapeDtypeStruct((B_pad, D_pad), out_dtype),
        grid_spec=pltpu.PrefetchScalarGridSpec(
            num_scalar_prefetch=0,
            grid=grid,
            in_specs=[
                pl.BlockSpec((block_b, D_pad), lambda i: (i, 0)),   # x tile
                const_spec((D_pad, L_pad)), const_spec((1, L_pad)),  # encoder_l1
                const_spec((L_pad, L_pad)), const_spec((1, L_pad)),  # encoder_l2
                const_spec((L_pad, L_pad)), const_spec((1, L_pad)),  # decoder_l1
                const_spec((L_pad, D_pad)), const_spec((1, D_pad)),  # decoder_l2
            ],
            out_specs=pl.BlockSpec((block_b, D_pad), lambda i: (i, 0)),
        ),
        compiler_params=pltpu.CompilerParams(
            dimension_semantics=("parallel",),
            vmem_limit_bytes=vmem_limit),
        cost_estimate=cost,
    )(x_p, w1, b1, w2, b2, w3, b3, w4, b4)

    if B_pad == B and D_pad == D_in:
        return out
    return out[:B, :D_in]


def init_params(key, input_shape, latent_dim):
    """Deterministic init mirroring nn.Linear shapes (weights stored transposed)."""
    ks = jax.random.split(key, 8)

    def linear(kw, kb, fan_in, fan_out):
        # PyTorch nn.Linear default: U(-1/sqrt(fan_in), 1/sqrt(fan_in))
        bound = 1.0 / jnp.sqrt(fan_in)
        w = jax.random.uniform(kw, (fan_in, fan_out), jnp.float32, -bound, bound)
        b = jax.random.uniform(kb, (1, fan_out), jnp.float32, -bound, bound)
        return w, b

    w1, b1 = linear(ks[0], ks[1], input_shape, latent_dim)   # encoder_l1
    w2, b2 = linear(ks[2], ks[3], latent_dim, latent_dim)    # encoder_l2
    w3, b3 = linear(ks[4], ks[5], latent_dim, latent_dim)    # decoder_l1
    w4, b4 = linear(ks[6], ks[7], latent_dim, input_shape)   # decoder_l2
    return dict(w1=w1, b1=b1, w2=w2, b2=b2, w3=w3, b3=b3, w4=w4, b4=b4)


def autoencoder_ref(x, p, compute_dtype=jnp.bfloat16):
    """Pure-JAX reference with the same bf16-operand / f32-accumulate recipe."""
    def lin_relu(h, w, b):
        acc = jnp.dot(h.astype(compute_dtype), w.astype(compute_dtype),
                      preferred_element_type=jnp.float32)
        return jnp.maximum(acc + b, 0.0)
    h = lin_relu(x, p["w1"], p["b1"])
    h = lin_relu(h, p["w2"], p["b2"])
    h = lin_relu(h, p["w3"], p["b3"])
    return lin_relu(h, p["w4"], p["b4"])


if __name__ == "__main__":
    INPUT_SHAPE = 256   # in_features of encoder_l1 / out_features of decoder_l2
    LATENT_DIM = 128
    BATCH = 8

    key = jax.random.PRNGKey(0)
    kx, kp = jax.random.split(key)
    x = jax.random.normal(kx, (BATCH, INPUT_SHAPE), dtype=jnp.float32)
    params = init_params(kp, INPUT_SHAPE, LATENT_DIM)

    out = autoencoder_forward(x, params)
    out = jax.block_until_ready(out)

    ref = autoencoder_ref(x, params)
    assert out.shape == (BATCH, INPUT_SHAPE)
    assert out.dtype == jnp.float32
    assert jnp.allclose(out, ref, atol=1e-2, rtol=1e-2), "mismatch vs reference"
    print("KERNEL_OK")
</pallas_src>

<mosaic_0001>
module attributes {stable_mosaic.version = 11 : i64} {
  func.func @_autoencoder_kernel(%arg0: i32, %arg1: memref<16x256xbf16, #tpu.memory_space<vmem>>, %arg2: memref<256x128xbf16, #tpu.memory_space<vmem>>, %arg3: memref<1x128xf32, #tpu.memory_space<vmem>>, %arg4: memref<128x128xbf16, #tpu.memory_space<vmem>>, %arg5: memref<1x128xf32, #tpu.memory_space<vmem>>, %arg6: memref<128x128xbf16, #tpu.memory_space<vmem>>, %arg7: memref<1x128xf32, #tpu.memory_space<vmem>>, %arg8: memref<128x256xbf16, #tpu.memory_space<vmem>>, %arg9: memref<1x256xf32, #tpu.memory_space<vmem>>, %arg10: memref<16x256xf32, #tpu.memory_space<vmem>>) attributes {dimension_semantics = [#tpu.dimension_semantics<parallel>], iteration_bounds = array<i64: 1>, scalar_prefetch = 0 : i64, scratch_operands = 0 : i64, tpu.core_type = #tpu.core_type<tc>, window_params = [{transform_indices = @transform_0, window_bounds = array<i64: 16, 256>}, {pipeline_mode = #tpu.pipeline_mode<synchronous>, transform_indices = @transform_1, window_bounds = array<i64: 256, 128>}, {pipeline_mode = #tpu.pipeline_mode<synchronous>, transform_indices = @transform_2, window_bounds = array<i64: 1, 128>}, {pipeline_mode = #tpu.pipeline_mode<synchronous>, transform_indices = @transform_3, window_bounds = array<i64: 128, 128>}, {pipeline_mode = #tpu.pipeline_mode<synchronous>, transform_indices = @transform_4, window_bounds = array<i64: 1, 128>}, {pipeline_mode = #tpu.pipeline_mode<synchronous>, transform_indices = @transform_5, window_bounds = array<i64: 128, 128>}, {pipeline_mode = #tpu.pipeline_mode<synchronous>, transform_indices = @transform_6, window_bounds = array<i64: 1, 128>}, {pipeline_mode = #tpu.pipeline_mode<synchronous>, transform_indices = @transform_7, window_bounds = array<i64: 128, 256>}, {pipeline_mode = #tpu.pipeline_mode<synchronous>, transform_indices = @transform_8, window_bounds = array<i64: 1, 256>}, {transform_indices = @transform_9, window_bounds = array<i64: 16, 256>}]} {
    %c0 = arith.constant 0 : index
    %c0_0 = arith.constant 0 : index
    %0 = vector.load %arg3[%c0, %c0_0] : memref<1x128xf32, #tpu.memory_space<vmem>>, vector<1x128xf32>
    %c0_1 = arith.constant 0 : index
    %c0_2 = arith.constant 0 : index
    %1 = vector.load %arg5[%c0_1, %c0_2] : memref<1x128xf32, #tpu.memory_space<vmem>>, vector<1x128xf32>
    %c0_3 = arith.constant 0 : index
    %c0_4 = arith.constant 0 : index
    %2 = vector.load %arg7[%c0_3, %c0_4] : memref<1x128xf32, #tpu.memory_space<vmem>>, vector<1x128xf32>
    %c0_5 = arith.constant 0 : index
    %c0_6 = arith.constant 0 : index
    %3 = vector.load %arg9[%c0_5, %c0_6] : memref<1x256xf32, #tpu.memory_space<vmem>>, vector<1x256xf32>
    %c0_7 = arith.constant 0 : index
    %c0_8 = arith.constant 0 : index
    %4 = vector.load %arg1[%c0_7, %c0_8] : memref<16x256xbf16, #tpu.memory_space<vmem>>, vector<16x256xbf16>
    %c0_9 = arith.constant 0 : index
    %c0_10 = arith.constant 0 : index
    %5 = vector.load %arg2[%c0_9, %c0_10] : memref<256x128xbf16, #tpu.memory_space<vmem>>, vector<256x128xbf16>
    %cst = arith.constant dense<0.000000e+00> : vector<16x128xf32>
    %6 = tpu.matmul %4, %5, %cst {dimension_numbers = #tpu.dot_dimension_numbers<[1], [0], [0], [1], [0, 0, 1, 1], [], []>} : vector<16x256xbf16>, vector<256x128xbf16>, vector<16x128xf32> -> vector<16x128xf32>
    %7 = vector.broadcast %0 : vector<1x128xf32> to vector<16x128xf32>
    %8 = arith.addf %6, %7 : vector<16x128xf32>
    %cst_11 = arith.constant 0.000000e+00 : f32
    %9 = vector.broadcast %cst_11 : f32 to vector<16x128xf32>
    %10 = arith.maximumf %8, %9 : vector<16x128xf32>
    %11 = arith.truncf %10 : vector<16x128xf32> to vector<16x128xbf16>
    %c0_12 = arith.constant 0 : index
    %c0_13 = arith.constant 0 : index
    %12 = vector.load %arg4[%c0_12, %c0_13] : memref<128x128xbf16, #tpu.memory_space<vmem>>, vector<128x128xbf16>
    %cst_14 = arith.constant dense<0.000000e+00> : vector<16x128xf32>
    %13 = tpu.matmul %11, %12, %cst_14 {dimension_numbers = #tpu.dot_dimension_numbers<[1], [0], [0], [1], [0, 0, 1, 1], [], []>} : vector<16x128xbf16>, vector<128x128xbf16>, vector<16x128xf32> -> vector<16x128xf32>
    %14 = vector.broadcast %1 : vector<1x128xf32> to vector<16x128xf32>
    %15 = arith.addf %13, %14 : vector<16x128xf32>
    %cst_15 = arith.constant 0.000000e+00 : f32
    %16 = vector.broadcast %cst_15 : f32 to vector<16x128xf32>
    %17 = arith.maximumf %15, %16 : vector<16x128xf32>
    %18 = arith.truncf %17 : vector<16x128xf32> to vector<16x128xbf16>
    %c0_16 = arith.constant 0 : index
    %c0_17 = arith.constant 0 : index
    %19 = vector.load %arg6[%c0_16, %c0_17] : memref<128x128xbf16, #tpu.memory_space<vmem>>, vector<128x128xbf16>
    %cst_18 = arith.constant dense<0.000000e+00> : vector<16x128xf32>
    %20 = tpu.matmul %18, %19, %cst_18 {dimension_numbers = #tpu.dot_dimension_numbers<[1], [0], [0], [1], [0, 0, 1, 1], [], []>} : vector<16x128xbf16>, vector<128x128xbf16>, vector<16x128xf32> -> vector<16x128xf32>
    %21 = vector.broadcast %2 : vector<1x128xf32> to vector<16x128xf32>
    %22 = arith.addf %20, %21 : vector<16x128xf32>
    %cst_19 = arith.constant 0.000000e+00 : f32
    %23 = vector.broadcast %cst_19 : f32 to vector<16x128xf32>
    %24 = arith.maximumf %22, %23 : vector<16x128xf32>
    %25 = arith.truncf %24 : vector<16x128xf32> to vector<16x128xbf16>
    %c0_20 = arith.constant 0 : index
    %c0_21 = arith.constant 0 : index
    %26 = vector.load %arg8[%c0_20, %c0_21] : memref<128x256xbf16, #tpu.memory_space<vmem>>, vector<128x256xbf16>
    %cst_22 = arith.constant dense<0.000000e+00> : vector<16x256xf32>
    %27 = tpu.matmul %25, %26, %cst_22 {dimension_numbers = #tpu.dot_dimension_numbers<[1], [0], [0], [1], [0, 0, 1, 1], [], []>} : vector<16x128xbf16>, vector<128x256xbf16>, vector<16x256xf32> -> vector<16x256xf32>
    %28 = vector.broadcast %3 : vector<1x256xf32> to vector<16x256xf32>
    %29 = arith.addf %27, %28 : vector<16x256xf32>
    %cst_23 = arith.constant 0.000000e+00 : f32
    %30 = vector.broadcast %cst_23 : f32 to vector<16x256xf32>
    %31 = arith.maximumf %29, %30 : vector<16x256xf32>
    %c0_24 = arith.constant 0 : index
    %c0_25 = arith.constant 0 : index
    %32 = vector.load %arg10[%c0_24, %c0_25] : memref<16x256xf32, #tpu.memory_space<vmem>>, vector<16x256xf32>
    tpu.vector_store %arg10[%c0_24, %c0_25], %31 {strides = array<i32>} : memref<16x256xf32, #tpu.memory_space<vmem>>, vector<16x256xf32>,
    return
  }
  func.func @transform_0(%arg0: i32) -> (i32, i32) {
    %c0_i32 = arith.constant 0 : i32
    %c0_i32_0 = arith.constant 0 : i32
    return %arg0, %c0_i32 : i32, i32
  }
  func.func @transform_1(%arg0: i32) -> (i32, i32) {
    %c0_i32 = arith.constant 0 : i32
    %c0_i32_0 = arith.constant 0 : i32
    %c0_i32_1 = arith.constant 0 : i32
    return %c0_i32, %c0_i32_0 : i32, i32
  }
  func.func @transform_2(%arg0: i32) -> (i32, i32) {
    %c0_i32 = arith.constant 0 : i32
    %c0_i32_0 = arith.constant 0 : i32
    %c0_i32_1 = arith.constant 0 : i32
    return %c0_i32, %c0_i32_0 : i32, i32
  }
  func.func @transform_3(%arg0: i32) -> (i32, i32) {
    %c0_i32 = arith.constant 0 : i32
    %c0_i32_0 = arith.constant 0 : i32
    %c0_i32_1 = arith.constant 0 : i32
    return %c0_i32, %c0_i32_0 : i32, i32
  }
  func.func @transform_4(%arg0: i32) -> (i32, i32) {
    %c0_i32 = arith.constant 0 : i32
    %c0_i32_0 = arith.constant 0 : i32
    %c0_i32_1 = arith.constant 0 : i32
    return %c0_i32, %c0_i32_0 : i32, i32
  }
  func.func @transform_5(%arg0: i32) -> (i32, i32) {
    %c0_i32 = arith.constant 0 : i32
    %c0_i32_0 = arith.constant 0 : i32
    %c0_i32_1 = arith.constant 0 : i32
    return %c0_i32, %c0_i32_0 : i32, i32
  }
  func.func @transform_6(%arg0: i32) -> (i32, i32) {
    %c0_i32 = arith.constant 0 : i32
    %c0_i32_0 = arith.constant 0 : i32
    %c0_i32_1 = arith.constant 0 : i32
    return %c0_i32, %c0_i32_0 : i32, i32
  }
  func.func @transform_7(%arg0: i32) -> (i32, i32) {
    %c0_i32 = arith.constant 0 : i32
    %c0_i32_0 = arith.constant 0 : i32
    %c0_i32_1 = arith.constant 0 : i32
    return %c0_i32, %c0_i32_0 : i32, i32
  }
  func.func @transform_8(%arg0: i32) -> (i32, i32) {
    %c0_i32 = arith.constant 0 : i32
    %c0_i32_0 = arith.constant 0 : i32
    %c0_i32_1 = arith.constant 0 : i32
    return %c0_i32, %c0_i32_0 : i32, i32
  }
  func.func @transform_9(%arg0: i32) -> (i32, i32) {
    %c0_i32 = arith.constant 0 : i32
    %c0_i32_0 = arith.constant 0 : i32
    return %arg0, %c0_i32 : i32, i32
  }
}

</mosaic_0001>

<llo_original>
// kernel: tpu_custom_call.1
$region0: #{tpu_custom_call.1}
  #allocation0 [shape = 'u32[]', space=smem, size = 0x4, offset = 0x4, fixed_abs, tag = 'smem constant byte address 0x4 - core index']
  #allocation1 [shape = 'u32[144,128]{1,0:T(1,128)}', space=vmem, size = 0x12000, scoped, tag = 'internal scratch']
  %s0 = inlined_call_operand.hbm [shape: bf16[16,256], index: 0, kind: input, shape index: {}]
  %s1 = inlined_call_operand.hbm [shape: bf16[256,128], index: 1, kind: input, shape index: {}]
  %s2 = inlined_call_operand.vmem [shape: f32[1,128], index: 2, kind: input, shape index: {}]
  %s3 = inlined_call_operand.hbm [shape: bf16[128,128], index: 3, kind: input, shape index: {}]
  %s4 = inlined_call_operand.vmem [shape: f32[1,128], index: 4, kind: input, shape index: {}]
  %s5 = inlined_call_operand.hbm [shape: bf16[128,128], index: 5, kind: input, shape index: {}]
  %s6 = inlined_call_operand.vmem [shape: f32[1,128], index: 6, kind: input, shape index: {}]
  %s7 = inlined_call_operand.hbm [shape: bf16[128,256], index: 7, kind: input, shape index: {}]
  %s8 = inlined_call_operand.vmem [shape: f32[1,256], index: 8, kind: input, shape index: {}]
  %s9 = inlined_call_operand.hbm [shape: f32[16,256], index: 9, kind: output, shape index: {}]
  %s10 = sld [smem:[#allocation0]]
  $region66: #{tpu_custom_call.1} parent=0
    _
  %s12 = ssub.s32 1, %s10
  %s13 = scalar_select 0, %s12, %s10
  $region1: #{tpu_custom_call.1} parent=0
    #allocation2 [shape = 'u8[8192]{0}', space=vmem, size = 0x2000, scoped, tag = 'input window, operand 0, single buffered']
    #allocation3 [shape = 's32[1]{0}', space=sflag, size = 0x4, scoped, tag = 'scoped memory for tpu_custom_call.1']
    #allocation4 [shape = 's32[1]{0}', space=sflag, size = 0x4, scoped, tag = 'scoped memory for tpu_custom_call.1']
    #allocation5 [shape = 'u8[65536]{0}', space=vmem, size = 0x10000, scoped, tag = 'input window, operand 1, single buffered']
    #allocation6 [shape = 's32[1]{0}', space=sflag, size = 0x4, scoped, tag = 'scoped memory for tpu_custom_call.1']
    #allocation7 [shape = 'u8[32768]{0}', space=vmem, size = 0x8000, scoped, tag = 'input window, operand 3, single buffered']
    #allocation8 [shape = 'u8[32768]{0}', space=vmem, size = 0x8000, scoped, tag = 'input window, operand 5, single buffered']
    #allocation9 [shape = 's32[1]{0}', space=sflag, size = 0x4, scoped, tag = 'scoped memory for tpu_custom_call.1']
    #allocation10 [shape = 'u8[65536]{0}', space=vmem, size = 0x10000, scoped, tag = 'input window, operand 7, single buffered']
    #allocation11 [shape = 'u8[16384]{0}', space=vmem, size = 0x4000, scoped, tag = 'output window, operand 0, single buffered']
    %14 = vsyncpa [#allocation3], 0
    %15 = vsyncpa [#allocation6], 0
    %16 = vsyncpa [#allocation9], 0
    %17 = vsyncpa [#allocation4], 0
    // Predicated region
    $region2: #{tpu_custom_call.1} parent=1 // pred_check
      _
    $region3: #{tpu_custom_call.1} parent=1 // pred_check_branch
      %19 = sbr.rel (0) target = $region5
    $region4: #{tpu_custom_call.1} parent=1 // pred_region
      %s21 = ssub.s32 256, 256
      %22 = vsyncadd [#allocation3], %s21
      %s23 = sshll.u32 [#allocation2], 4
      %s24 = int_to_ptr.vmem [resolvable:$true] %s23
      %29 = dma.hbm_to_vmem [thread:$0]  %s0, 256, %s24, [#allocation3], 128, 128, 8
    $region5: #{tpu_custom_call.1} parent=1 // pred_fallthru
      _
    // Predicated region
    $region6: #{tpu_custom_call.1} parent=1 // pred_check
      _
    $region7: #{tpu_custom_call.1} parent=1 // pred_check_branch
      %31 = sbr.rel (0) target = $region9
    $region8: #{tpu_custom_call.1} parent=1 // pred_region
      %s33 = ssub.s32 2048, 2048
      %34 = vsyncadd [#allocation6], %s33
      %s35 = sshll.u32 [#allocation5], 4
      %s36 = int_to_ptr.vmem [resolvable:$true] %s35
      %41 = dma.hbm_to_vmem [thread:$0]  %s1, 2048, %s36, [#allocation6], 64, 64, 4
    $region9: #{tpu_custom_call.1} parent=1 // pred_fallthru
      _
    // Predicated region
    $region10: #{tpu_custom_call.1} parent=1 // pred_check
      _
    $region11: #{tpu_custom_call.1} parent=1 // pred_check_branch
      %43 = sbr.rel (0) target = $region13
    $region12: #{tpu_custom_call.1} parent=1 // pred_region
      _
    $region13: #{tpu_custom_call.1} parent=1 // pred_fallthru
      _
    // Predicated region
    $region14: #{tpu_custom_call.1} parent=1 // pred_check
      _
    $region15: #{tpu_custom_call.1} parent=1 // pred_check_branch
      %45 = sbr.rel (0) target = $region17
    $region16: #{tpu_custom_call.1} parent=1 // pred_region
      %s47 = ssub.s32 1024, 1024
      %48 = vsyncadd [#allocation6], %s47
      %s49 = sshll.u32 [#allocation7], 4
      %s50 = int_to_ptr.vmem [resolvable:$true] %s49
      %55 = dma.hbm_to_vmem [thread:$0]  %s3, 1024, %s50, [#allocation6], 64, 64, 4
    $region17: #{tpu_custom_call.1} parent=1 // pred_fallthru
      _
    // Predicated region
    $region18: #{tpu_custom_call.1} parent=1 // pred_check
      _
    $region19: #{tpu_custom_call.1} parent=1 // pred_check_branch
      %57 = sbr.rel (0) target = $region21
    $region20: #{tpu_custom_call.1} parent=1 // pred_region
      _
    $region21: #{tpu_custom_call.1} parent=1 // pred_fallthru
      _
    // Predicated region
    $region22: #{tpu_custom_call.1} parent=1 // pred_check
      _
    $region23: #{tpu_custom_call.1} parent=1 // pred_check_branch
      %59 = sbr.rel (0) target = $region25
    $region24: #{tpu_custom_call.1} parent=1 // pred_region
      %s61 = ssub.s32 1024, 1024
      %62 = vsyncadd [#allocation9], %s61
      %s63 = sshll.u32 [#allocation8], 4
      %s64 = int_to_ptr.vmem [resolvable:$true] %s63
      %69 = dma.hbm_to_vmem [thread:$0]  %s5, 1024, %s64, [#allocation9], 64, 64, 4
    $region25: #{tpu_custom_call.1} parent=1 // pred_fallthru
      _
    // Predicated region
    $region26: #{tpu_custom_call.1} parent=1 // pred_check
      _
    $region27: #{tpu_custom_call.1} parent=1 // pred_check_branch
      %71 = sbr.rel (0) target = $region29
    $region28: #{tpu_custom_call.1} parent=1 // pred_region
      _
    $region29: #{tpu_custom_call.1} parent=1 // pred_fallthru
      _
    // Predicated region
    $region30: #{tpu_custom_call.1} parent=1 // pred_check
      _
    $region31: #{tpu_custom_call.1} parent=1 // pred_check_branch
      %73 = sbr.rel (0) target = $region33
    $region32: #{tpu_custom_call.1} parent=1 // pred_region
      %s75 = ssub.s32 2048, 2048
      %76 = vsyncadd [#allocation9], %s75
      %s77 = sshll.u32 [#allocation10], 4
      %s78 = int_to_ptr.vmem [resolvable:$true] %s77
      %83 = dma.hbm_to_vmem [thread:$0]  %s7, 2048, %s78, [#allocation9], 128, 128, 8
    $region33: #{tpu_custom_call.1} parent=1 // pred_fallthru
      _
    // Predicated region
    $region34: #{tpu_custom_call.1} parent=1 // pred_check
      _
    $region35: #{tpu_custom_call.1} parent=1 // pred_check_branch
      %85 = sbr.rel (0) target = $region37
    $region36: #{tpu_custom_call.1} parent=1 // pred_region
      _
    $region37: #{tpu_custom_call.1} parent=1 // pred_fallthru
      _
    // Predicated region
    $region38: #{tpu_custom_call.1} parent=1 // pred_check
      _
    $region39: #{tpu_custom_call.1} parent=1 // pred_check_branch
      %87 = sbr.rel (0) target = $region41
    $region40: #{tpu_custom_call.1} parent=1 // pred_region
      %88 = dma.done [#allocation3], 256
    $region41: #{tpu_custom_call.1} parent=1 // pred_fallthru
      _
    // Predicated region
    $region42: #{tpu_custom_call.1} parent=1 // pred_check
      _
    $region43: #{tpu_custom_call.1} parent=1 // pred_check_branch
      %90 = sbr.rel (0) target = $region45
    $region44: #{tpu_custom_call.1} parent=1 // pred_region
      %91 = dma.done [#allocation6], 2048
    $region45: #{tpu_custom_call.1} parent=1 // pred_fallthru
      _
    // Predicated region
    $region46: #{tpu_custom_call.1} parent=1 // pred_check
      _
    $region47: #{tpu_custom_call.1} parent=1 // pred_check_branch
      %93 = sbr.rel (0) target = $region49
    $region48: #{tpu_custom_call.1} parent=1 // pred_region
      %94 = dma.done [#allocation6], 1024
    $region49: #{tpu_custom_call.1} parent=1 // pred_fallthru
      _
    // Predicated region
    $region50: #{tpu_custom_call.1} parent=1 // pred_check
      _
    $region51: #{tpu_custom_call.1} parent=1 // pred_check_branch
      %96 = sbr.rel (0) target = $region53
    $region52: #{tpu_custom_call.1} parent=1 // pred_region
      %97 = dma.done [#allocation9], 1024
    $region53: #{tpu_custom_call.1} parent=1 // pred_fallthru
      _
    // Predicated region
    $region54: #{tpu_custom_call.1} parent=1 // pred_check
      _
    $region55: #{tpu_custom_call.1} parent=1 // pred_check_branch
      %99 = sbr.rel (0) target = $region57
    $region56: #{tpu_custom_call.1} parent=1 // pred_region
      %100 = dma.done [#allocation9], 2048
    $region57: #{tpu_custom_call.1} parent=1 // pred_fallthru
      _
    %v102 = vld [vmem:[%s2] sm:$0x1]
    %v103 = vld [vmem:[%s4] sm:$0x1]
    %v104 = vld [vmem:[%s6] sm:$0x1]
    %v105 = vld [vmem:[%s8] sm:$0x3]
    %v106 = vld [vmem:[#allocation2] sm:$0xff]
    %v107 = vld [vmem:[#allocation2 + $0x8] sm:$0xff]
    %v108 = vld [vmem:[#allocation5] sm:$0xf]
    %v109 = vld [vmem:[#allocation5 + $0x4] sm:$0xf]
    %v110 = vld [vmem:[#allocation5 + $0x8] sm:$0xf]
    %v111 = vld [vmem:[#allocation5 + $0xc] sm:$0xf]
    %v112 = vld [vmem:[#allocation5 + $0x10] sm:$0xf]
    %v113 = vld [vmem:[#allocation5 + $0x14] sm:$0xf]
    %v114 = vld [vmem:[#allocation5 + $0x18] sm:$0xf]
    %v115 = vld [vmem:[#allocation5 + $0x1c] sm:$0xf]
    %v116 = vld [vmem:[#allocation5 + $0x20] sm:$0xf]
    %v117 = vld [vmem:[#allocation5 + $0x24] sm:$0xf]
    %v118 = vld [vmem:[#allocation5 + $0x28] sm:$0xf]
    %v119 = vld [vmem:[#allocation5 + $0x2c] sm:$0xf]
    %v120 = vld [vmem:[#allocation5 + $0x30] sm:$0xf]
    %v121 = vld [vmem:[#allocation5 + $0x34] sm:$0xf]
    %v122 = vld [vmem:[#allocation5 + $0x38] sm:$0xf]
    %v123 = vld [vmem:[#allocation5 + $0x3c] sm:$0xf]
    %v124 = vld [vmem:[#allocation5 + $0x40] sm:$0xf]
    %v125 = vld [vmem:[#allocation5 + $0x44] sm:$0xf]
    %v126 = vld [vmem:[#allocation5 + $0x48] sm:$0xf]
    %v127 = vld [vmem:[#allocation5 + $0x4c] sm:$0xf]
    %v128 = vld [vmem:[#allocation5 + $0x50] sm:$0xf]
    %v129 = vld [vmem:[#allocation5 + $0x54] sm:$0xf]
    %v130 = vld [vmem:[#allocation5 + $0x58] sm:$0xf]
    %v131 = vld [vmem:[#allocation5 + $0x5c] sm:$0xf]
    %v132 = vld [vmem:[#allocation5 + $0x60] sm:$0xf]
    %v133 = vld [vmem:[#allocation5 + $0x64] sm:$0xf]
    %v134 = vld [vmem:[#allocation5 + $0x68] sm:$0xf]
    %v135 = vld [vmem:[#allocation5 + $0x6c] sm:$0xf]
    %v136 = vld [vmem:[#allocation5 + $0x70] sm:$0xf]
    %v137 = vld [vmem:[#allocation5 + $0x74] sm:$0xf]
    %v138 = vld [vmem:[#allocation5 + $0x78] sm:$0xf]
    %v139 = vld [vmem:[#allocation5 + $0x7c] sm:$0xf]
    %v141 = vlaneseq
    %v142 = vshrl.u32 %v141, 7
    %v143 = vsub.s32 0, %v142
    %v144 = vrot.slane %v102, %v143
    %v148 = vunpack.c.l.b16 %v106
    %v149 = vunpack.c.h.b16 %v106
    %v150 = vunpack.c.l.b16 %v107
    %v151 = vunpack.c.h.b16 %v107
    %v152 = vpack.c.b16 %v150, %v148
    %v153 = vpack.c.b16 %v151, %v149
    %v188 = vunpack.c.l.b16 %v108
    %v189 = vunpack.c.l.b16 %v109
    %v190 = vunpack.c.l.b16 %v110
    %v191 = vunpack.c.l.b16 %v111
    %v192 = vunpack.c.l.b16 %v112
    %v193 = vunpack.c.l.b16 %v113
    %v194 = vunpack.c.l.b16 %v114
    %v195 = vunpack.c.l.b16 %v115
    %v196 = vunpack.c.l.b16 %v116
    %v197 = vunpack.c.l.b16 %v117
    %v198 = vunpack.c.l.b16 %v118
    %v199 = vunpack.c.l.b16 %v119
    %v200 = vunpack.c.l.b16 %v120
    %v201 = vunpack.c.l.b16 %v121
    %v202 = vunpack.c.l.b16 %v122
    %v203 = vunpack.c.l.b16 %v123
    %v204 = vunpack.c.l.b16 %v124
    %v205 = vunpack.c.l.b16 %v125
    %v206 = vunpack.c.l.b16 %v126
    %v207 = vunpack.c.l.b16 %v127
    %v208 = vunpack.c.l.b16 %v128
    %v209 = vunpack.c.l.b16 %v129
    %v210 = vunpack.c.l.b16 %v130
    %v211 = vunpack.c.l.b16 %v131
    %v212 = vunpack.c.l.b16 %v132
    %v213 = vunpack.c.l.b16 %v133
    %v214 = vunpack.c.l.b16 %v134
    %v215 = vunpack.c.l.b16 %v135
    %v216 = vunpack.c.l.b16 %v136
    %v217 = vunpack.c.l.b16 %v137
    %v218 = vunpack.c.l.b16 %v138
    %v219 = vunpack.c.l.b16 %v139
    %v220 = vpack.c.b16 %v189, %v188
    %v221 = vpack.c.b16 %v191, %v190
    %v222 = vpack.c.b16 %v193, %v192
    %v223 = vpack.c.b16 %v195, %v194
    %v224 = vpack.c.b16 %v197, %v196
    %v225 = vpack.c.b16 %v199, %v198
    %v226 = vpack.c.b16 %v201, %v200
    %v227 = vpack.c.b16 %v203, %v202
    %v228 = vpack.c.b16 %v205, %v204
    %v229 = vpack.c.b16 %v207, %v206
    %v230 = vpack.c.b16 %v209, %v208
    %v231 = vpack.c.b16 %v211, %v210
    %v232 = vpack.c.b16 %v213, %v212
    %v233 = vpack.c.b16 %v215, %v214
    %v234 = vpack.c.b16 %v217, %v216
    %v235 = vpack.c.b16 %v219, %v218
    %252 = vmatprep.subr.bf16.mxu0 0
    %253 = vmatpush1.bf16.msra.mxu0 %v227
    %254 = vmatprep.subr.bf16.mxu0 0
    %255 = vmatpush1.bf16.msra.mxu0 %v226
    %256 = vmatprep.subr.bf16.mxu0 0
    %257 = vmatpush1.bf16.msra.mxu0 %v225
    %258 = vmatprep.subr.bf16.mxu0 0
    %259 = vmatpush1.bf16.msra.mxu0 %v224
    %260 = vmatprep.subr.bf16.mxu0 0
    %261 = vmatpush1.bf16.msra.mxu0 %v223
    %262 = vmatprep.subr.bf16.mxu0 0
    %263 = vmatpush1.bf16.msra.mxu0 %v222
    %264 = vmatprep.subr.bf16.mxu0 0
    %265 = vmatpush1.bf16.msra.mxu0 %v221
    %266 = vmatprep.subr.bf16.mxu0 0
    %267 = vmatpush1.bf16.msra.mxu0 %v220
    %268 = vmatprep.subr.bf16.mxu0 0
    %269 = vmatpush2.bf16.msra.mxu0 %v235
    %270 = vmatprep.subr.bf16.mxu0 0
    %271 = vmatpush2.bf16.msra.mxu0 %v234
    %272 = vmatprep.subr.bf16.mxu0 0
    %273 = vmatpush2.bf16.msra.mxu0 %v233
    %274 = vmatprep.subr.bf16.mxu0 0
    %275 = vmatpush2.bf16.msra.mxu0 %v232
    %276 = vmatprep.subr.bf16.mxu0 0
    %277 = vmatpush2.bf16.msra.mxu0 %v231
    %278 = vmatprep.subr.bf16.mxu0 0
    %279 = vmatpush2.bf16.msra.mxu0 %v230
    %280 = vmatprep.subr.bf16.mxu0 0
    %281 = vmatpush2.bf16.msra.mxu0 %v229
    %282 = vmatprep.subr.bf16.mxu0 0
    %283 = vmatpush2.bf16.msra.mxu0 %v228
    %284 = vmatprep.mubr.bf16.mxu0 %v153
    %285 = vmatmul.mubr.bf16.gmra.mxu0 %v152
    %v286 = vpop.f32.mrf.mxu0
    %v287 = vadd.f32 %v144, %v286
    %v288 = vpop.f32.mrf.mxu0
    %v289 = vpop.f32.mrf.mxu0
    %v290 = vadd.f32 %v144, %v289
    %v291 = vpop.f32.mrf.mxu0
    %292 = vdwg.mxu0
    %v293 = vmax.f32 %v287, 0.0
    %v294 = vmax.f32 %v290, 0.0
    %v295 = vpack.c.bf16 %v294, %v293
    %v296 = vld [vmem:[#allocation7] sm:$0xf]
    %v297 = vld [vmem:[#allocation7 + $0x4] sm:$0xf]
    %v298 = vld [vmem:[#allocation7 + $0x8] sm:$0xf]
    %v299 = vld [vmem:[#allocation7 + $0xc] sm:$0xf]
    %v300 = vld [vmem:[#allocation7 + $0x10] sm:$0xf]
    %v301 = vld [vmem:[#allocation7 + $0x14] sm:$0xf]
    %v302 = vld [vmem:[#allocation7 + $0x18] sm:$0xf]
    %v303 = vld [vmem:[#allocation7 + $0x1c] sm:$0xf]
    %v304 = vld [vmem:[#allocation7 + $0x20] sm:$0xf]
    %v305 = vld [vmem:[#allocation7 + $0x24] sm:$0xf]
    %v306 = vld [vmem:[#allocation7 + $0x28] sm:$0xf]
    %v307 = vld [vmem:[#allocation7 + $0x2c] sm:$0xf]
    %v308 = vld [vmem:[#allocation7 + $0x30] sm:$0xf]
    %v309 = vld [vmem:[#allocation7 + $0x34] sm:$0xf]
    %v310 = vld [vmem:[#allocation7 + $0x38] sm:$0xf]
    %v311 = vld [vmem:[#allocation7 + $0x3c] sm:$0xf]
    %v313 = vlaneseq
    %v314 = vshrl.u32 %v313, 7
    %v315 = vsub.s32 0, %v314
    %v316 = vrot.slane %v103, %v315
    %v334 = vunpack.c.l.b16 %v296
    %v335 = vunpack.c.l.b16 %v297
    %v336 = vunpack.c.l.b16 %v298
    %v337 = vunpack.c.l.b16 %v299
    %v338 = vunpack.c.l.b16 %v300
    %v339 = vunpack.c.l.b16 %v301
    %v340 = vunpack.c.l.b16 %v302
    %v341 = vunpack.c.l.b16 %v303
    %v342 = vunpack.c.l.b16 %v304
    %v343 = vunpack.c.l.b16 %v305
    %v344 = vunpack.c.l.b16 %v306
    %v345 = vunpack.c.l.b16 %v307
    %v346 = vunpack.c.l.b16 %v308
    %v347 = vunpack.c.l.b16 %v309
    %v348 = vunpack.c.l.b16 %v310
    %v349 = vunpack.c.l.b16 %v311
    %v350 = vpack.c.b16 %v335, %v334
    %v351 = vpack.c.b16 %v337, %v336
    %v352 = vpack.c.b16 %v339, %v338
    %v353 = vpack.c.b16 %v341, %v340
    %v354 = vpack.c.b16 %v343, %v342
    %v355 = vpack.c.b16 %v345, %v344
    %v356 = vpack.c.b16 %v347, %v346
    %v357 = vpack.c.b16 %v349, %v348
    %366 = vmatprep.subr.bf16.mxu0 0
    %367 = vmatpush1.bf16.msra.mxu0 %v357
    %368 = vmatprep.subr.bf16.mxu0 0
    %369 = vmatpush1.bf16.msra.mxu0 %v356
    %370 = vmatprep.subr.bf16.mxu0 0
    %371 = vmatpush1.bf16.msra.mxu0 %v355
    %372 = vmatprep.subr.bf16.mxu0 0
    %373 = vmatpush1.bf16.msra.mxu0 %v354
    %374 = vmatprep.subr.bf16.mxu0 0
    %375 = vmatpush1.bf16.msra.mxu0 %v353
    %376 = vmatprep.subr.bf16.mxu0 0
    %377 = vmatpush1.bf16.msra.mxu0 %v352
    %378 = vmatprep.subr.bf16.mxu0 0
    %379 = vmatpush1.bf16.msra.mxu0 %v351
    %380 = vmatprep.subr.bf16.mxu0 0
    %381 = vmatpush1.bf16.msra.mxu0 %v350
    %382 = vmatprep.subr.bf16.mxu0 0
    %383 = vmatpush2.bf16.msra.mxu0 0
    %384 = vmatprep.subr.bf16.mxu0 0
    %385 = vmatpush2.bf16.msra.mxu0 0
    %386 = vmatprep.subr.bf16.mxu0 0
    %387 = vmatpush2.bf16.msra.mxu0 0
    %388 = vmatprep.subr.bf16.mxu0 0
    %389 = vmatpush2.bf16.msra.mxu0 0
    %390 = vmatprep.subr.bf16.mxu0 0
    %391 = vmatpush2.bf16.msra.mxu0 0
    %392 = vmatprep.subr.bf16.mxu0 0
    %393 = vmatpush2.bf16.msra.mxu0 0
    %394 = vmatprep.subr.bf16.mxu0 0
    %395 = vmatpush2.bf16.msra.mxu0 0
    %396 = vmatprep.subr.bf16.mxu0 0
    %397 = vmatpush2.bf16.msra.mxu0 0
    %398 = vmatprep.mubr.bf16.mxu0 0
    %399 = vmatmul.mubr.bf16.gmra.mxu0 %v295
    %v400 = vpop.f32.mrf.mxu0
    %v401 = vadd.f32 %v316, %v400
    %v402 = vpop.f32.mrf.mxu0
    %v403 = vpop.f32.mrf.mxu0
    %v404 = vadd.f32 %v316, %v403
    %v405 = vpop.f32.mrf.mxu0
    %406 = vdwg.mxu0
    %v407 = vmax.f32 %v401, 0.0
    %v408 = vmax.f32 %v404, 0.0
    %v409 = vpack.c.bf16 %v408, %v407
    %v410 = vld [vmem:[#allocation8] sm:$0xf]
    %v411 = vld [vmem:[#allocation8 + $0x4] sm:$0xf]
    %v412 = vld [vmem:[#allocation8 + $0x8] sm:$0xf]
    %v413 = vld [vmem:[#allocation8 + $0xc] sm:$0xf]
    %v414 = vld [vmem:[#allocation8 + $0x10] sm:$0xf]
    %v415 = vld [vmem:[#allocation8 + $0x14] sm:$0xf]
    %v416 = vld [vmem:[#allocation8 + $0x18] sm:$0xf]
    %v417 = vld [vmem:[#allocation8 + $0x1c] sm:$0xf]
    %v418 = vld [vmem:[#allocation8 + $0x20] sm:$0xf]
    %v419 = vld [vmem:[#allocation8 + $0x24] sm:$0xf]
    %v420 = vld [vmem:[#allocation8 + $0x28] sm:$0xf]
    %v421 = vld [vmem:[#allocation8 + $0x2c] sm:$0xf]
    %v422 = vld [vmem:[#allocation8 + $0x30] sm:$0xf]
    %v423 = vld [vmem:[#allocation8 + $0x34] sm:$0xf]
    %v424 = vld [vmem:[#allocation8 + $0x38] sm:$0xf]
    %v425 = vld [vmem:[#allocation8 + $0x3c] sm:$0xf]
    %v427 = vlaneseq
    %v428 = vshrl.u32 %v427, 7
    %v429 = vsub.s32 0, %v428
    %v430 = vrot.slane %v104, %v429
    %v448 = vunpack.c.l.b16 %v410
    %v449 = vunpack.c.l.b16 %v411
    %v450 = vunpack.c.l.b16 %v412
    %v451 = vunpack.c.l.b16 %v413
    %v452 = vunpack.c.l.b16 %v414
    %v453 = vunpack.c.l.b16 %v415
    %v454 = vunpack.c.l.b16 %v416
    %v455 = vunpack.c.l.b16 %v417
    %v456 = vunpack.c.l.b16 %v418
    %v457 = vunpack.c.l.b16 %v419
    %v458 = vunpack.c.l.b16 %v420
    %v459 = vunpack.c.l.b16 %v421
    %v460 = vunpack.c.l.b16 %v422
    %v461 = vunpack.c.l.b16 %v423
    %v462 = vunpack.c.l.b16 %v424
    %v463 = vunpack.c.l.b16 %v425
    %v464 = vpack.c.b16 %v449, %v448
    %v465 = vpack.c.b16 %v451, %v450
    %v466 = vpack.c.b16 %v453, %v452
    %v467 = vpack.c.b16 %v455, %v454
    %v468 = vpack.c.b16 %v457, %v456
    %v469 = vpack.c.b16 %v459, %v458
    %v470 = vpack.c.b16 %v461, %v460
    %v471 = vpack.c.b16 %v463, %v462
    %480 = vmatprep.subr.bf16.mxu0 0
    %481 = vmatpush1.bf16.msra.mxu0 %v471
    %482 = vmatprep.subr.bf16.mxu0 0
    %483 = vmatpush1.bf16.msra.mxu0 %v470
    %484 = vmatprep.subr.bf16.mxu0 0
    %485 = vmatpush1.bf16.msra.mxu0 %v469
    %486 = vmatprep.subr.bf16.mxu0 0
    %487 = vmatpush1.bf16.msra.mxu0 %v468
    %488 = vmatprep.subr.bf16.mxu0 0
    %489 = vmatpush1.bf16.msra.mxu0 %v467
    %490 = vmatprep.subr.bf16.mxu0 0
    %491 = vmatpush1.bf16.msra.mxu0 %v466
    %492 = vmatprep.subr.bf16.mxu0 0
    %493 = vmatpush1.bf16.msra.mxu0 %v465
    %494 = vmatprep.subr.bf16.mxu0 0
    %495 = vmatpush1.bf16.msra.mxu0 %v464
    %496 = vmatprep.subr.bf16.mxu0 0
    %497 = vmatpush2.bf16.msra.mxu0 0
    %498 = vmatprep.subr.bf16.mxu0 0
    %499 = vmatpush2.bf16.msra.mxu0 0
    %500 = vmatprep.subr.bf16.mxu0 0
    %501 = vmatpush2.bf16.msra.mxu0 0
    %502 = vmatprep.subr.bf16.mxu0 0
    %503 = vmatpush2.bf16.msra.mxu0 0
    %504 = vmatprep.subr.bf16.mxu0 0
    %505 = vmatpush2.bf16.msra.mxu0 0
    %506 = vmatprep.subr.bf16.mxu0 0
    %507 = vmatpush2.bf16.msra.mxu0 0
    %508 = vmatprep.subr.bf16.mxu0 0
    %509 = vmatpush2.bf16.msra.mxu0 0
    %510 = vmatprep.subr.bf16.mxu0 0
    %511 = vmatpush2.bf16.msra.mxu0 0
    %512 = vmatprep.mubr.bf16.mxu0 0
    %513 = vmatmul.mubr.bf16.gmra.mxu0 %v409
    %v514 = vpop.f32.mrf.mxu0
    %v515 = vadd.f32 %v430, %v514
    %v516 = vpop.f32.mrf.mxu0
    %v517 = vpop.f32.mrf.mxu0
    %v518 = vadd.f32 %v430, %v517
    %v519 = vpop.f32.mrf.mxu0
    %520 = vdwg.mxu0
    %v521 = vmax.f32 %v515, 0.0
    %v522 = vmax.f32 %v518, 0.0
    %v523 = vpack.c.bf16 %v522, %v521
    %v524 = vld [vmem:[#allocation10] sm:$0xff]
    %v525 = vld [vmem:[#allocation10 + $0x8] sm:$0xff]
    %v526 = vld [vmem:[#allocation10 + $0x10] sm:$0xff]
    %v527 = vld [vmem:[#allocation10 + $0x18] sm:$0xff]
    %v528 = vld [vmem:[#allocation10 + $0x20] sm:$0xff]
    %v529 = vld [vmem:[#allocation10 + $0x28] sm:$0xff]
    %v530 = vld [vmem:[#allocation10 + $0x30] sm:$0xff]
    %v531 = vld [vmem:[#allocation10 + $0x38] sm:$0xff]
    %v532 = vld [vmem:[#allocation10 + $0x40] sm:$0xff]
    %v533 = vld [vmem:[#allocation10 + $0x48] sm:$0xff]
    %v534 = vld [vmem:[#allocation10 + $0x50] sm:$0xff]
    %v535 = vld [vmem:[#allocation10 + $0x58] sm:$0xff]
    %v536 = vld [vmem:[#allocation10 + $0x60] sm:$0xff]
    %v537 = vld [vmem:[#allocation10 + $0x68] sm:$0xff]
    %v538 = vld [vmem:[#allocation10 + $0x70] sm:$0xff]
    %v539 = vld [vmem:[#allocation10 + $0x78] sm:$0xff]
    %v541 = vlaneseq
    %v542 = vshrl.u32 %v541, 7
    %v543 = vsub.s32 0, %v542
    %v544 = vrot.slane %v105, %v543
    %v545 = vlaneseq
    %v546 = vshrl.u32 %v545, 7
    %v547 = vsub.s32 1, %v546
    %v548 = vrot.slane %v105, %v547
    %v567 = vunpack.c.l.b16 %v524
    %v568 = vunpack.c.h.b16 %v524
    %v569 = vunpack.c.l.b16 %v525
    %v570 = vunpack.c.h.b16 %v525
    %v571 = vunpack.c.l.b16 %v526
    %v572 = vunpack.c.h.b16 %v526
    %v573 = vunpack.c.l.b16 %v527
    %v574 = vunpack.c.h.b16 %v527
    %v575 = vunpack.c.l.b16 %v528
    %v576 = vunpack.c.h.b16 %v528
    %v577 = vunpack.c.l.b16 %v529
    %v578 = vunpack.c.h.b16 %v529
    %v579 = vunpack.c.l.b16 %v530
    %v580 = vunpack.c.h.b16 %v530
    %v581 = vunpack.c.l.b16 %v531
    %v582 = vunpack.c.h.b16 %v531
    %v583 = vunpack.c.l.b16 %v532
    %v584 = vunpack.c.h.b16 %v532
    %v585 = vunpack.c.l.b16 %v533
    %v586 = vunpack.c.h.b16 %v533
    %v587 = vunpack.c.l.b16 %v534
    %v588 = vunpack.c.h.b16 %v534
    %v589 = vunpack.c.l.b16 %v535
    %v590 = vunpack.c.h.b16 %v535
    %v591 = vunpack.c.l.b16 %v536
    %v592 = vunpack.c.h.b16 %v536
    %v593 = vunpack.c.l.b16 %v537
    %v594 = vunpack.c.h.b16 %v537
    %v595 = vunpack.c.l.b16 %v538
    %v596 = vunpack.c.h.b16 %v538
    %v597 = vunpack.c.l.b16 %v539
    %v598 = vunpack.c.h.b16 %v539
    %v599 = vpack.c.b16 %v569, %v567
    %v600 = vpack.c.b16 %v570, %v568
    %v601 = vpack.c.b16 %v573, %v571
    %v602 = vpack.c.b16 %v574, %v572
    %v603 = vpack.c.b16 %v577, %v575
    %v604 = vpack.c.b16 %v578, %v576
    %v605 = vpack.c.b16 %v581, %v579
    %v606 = vpack.c.b16 %v582, %v580
    %v607 = vpack.c.b16 %v585, %v583
    %v608 = vpack.c.b16 %v586, %v584
    %v609 = vpack.c.b16 %v589, %v587
    %v610 = vpack.c.b16 %v590, %v588
    %v611 = vpack.c.b16 %v593, %v591
    %v612 = vpack.c.b16 %v594, %v592
    %v613 = vpack.c.b16 %v597, %v595
    %v614 = vpack.c.b16 %v598, %v596
    %631 = vmatprep.subr.bf16.mxu0 %v614
    %632 = vmatpush1.bf16.msra.mxu0 %v613
    %633 = vmatprep.subr.bf16.mxu0 %v612
    %634 = vmatpush1.bf16.msra.mxu0 %v611
    %635 = vmatprep.subr.bf16.mxu0 %v610
    %636 = vmatpush1.bf16.msra.mxu0 %v609
    %637 = vmatprep.subr.bf16.mxu0 %v608
    %638 = vmatpush1.bf16.msra.mxu0 %v607
    %639 = vmatprep.subr.bf16.mxu0 %v606
    %640 = vmatpush1.bf16.msra.mxu0 %v605
    %641 = vmatprep.subr.bf16.mxu0 %v604
    %642 = vmatpush1.bf16.msra.mxu0 %v603
    %643 = vmatprep.subr.bf16.mxu0 %v602
    %644 = vmatpush1.bf16.msra.mxu0 %v601
    %645 = vmatprep.subr.bf16.mxu0 %v600
    %646 = vmatpush1.bf16.msra.mxu0 %v599
    %647 = vmatprep.subr.bf16.mxu0 0
    %648 = vmatpush2.bf16.msra.mxu0 0
    %649 = vmatprep.subr.bf16.mxu0 0
    %650 = vmatpush2.bf16.msra.mxu0 0
    %651 = vmatprep.subr.bf16.mxu0 0
    %652 = vmatpush2.bf16.msra.mxu0 0
    %653 = vmatprep.subr.bf16.mxu0 0
    %654 = vmatpush2.bf16.msra.mxu0 0
    %655 = vmatprep.subr.bf16.mxu0 0
    %656 = vmatpush2.bf16.msra.mxu0 0
    %657 = vmatprep.subr.bf16.mxu0 0
    %658 = vmatpush2.bf16.msra.mxu0 0
    %659 = vmatprep.subr.bf16.mxu0 0
    %660 = vmatpush2.bf16.msra.mxu0 0
    %661 = vmatprep.subr.bf16.mxu0 0
    %662 = vmatpush2.bf16.msra.mxu0 0
    %663 = vmatprep.mubr.bf16.mxu0 0
    %664 = vmatmul.mubr.bf16.gmra.mxu0 %v523
    %v665 = vpop.f32.mrf.mxu0
    %v666 = vadd.f32 %v544, %v665
    %v667 = vpop.f32.mrf.mxu0
    %v668 = vadd.f32 %v548, %v667
    %v669 = vpop.f32.mrf.mxu0
    %v670 = vadd.f32 %v544, %v669
    %v671 = vpop.f32.mrf.mxu0
    %v672 = vadd.f32 %v548, %v671
    %673 = vdwg.mxu0
    %v674 = vmax.f32 %v666, 0.0
    %v675 = vmax.f32 %v668, 0.0
    %v676 = vmax.f32 %v670, 0.0
    %v677 = vmax.f32 %v672, 0.0
    %678 = vst [vmem:[#allocation11] sm:$0xff] %v674
    %679 = vst [vmem:[#allocation11 + $0x8] sm:$0xff] %v675
    %680 = vst [vmem:[#allocation11 + $0x10] sm:$0xff] %v676
    %681 = vst [vmem:[#allocation11 + $0x18] sm:$0xff] %v677
    // Predicated region
    $region58: #{tpu_custom_call.1} parent=1 // pred_check
      _
    $region59: #{tpu_custom_call.1} parent=1 // pred_check_branch
      %683 = sbr.rel (0) target = $region61
    $region60: #{tpu_custom_call.1} parent=1 // pred_region
      %s685 = ssub.s32 512, 512
      %686 = vsyncadd [#allocation4], %s685
      %s687 = sshll.u32 [#allocation11], 4
      %s688 = int_to_ptr.vmem [resolvable:$true] %s687
      %693 = dma.vmem_to_hbm [thread:$0]  %s688, 512, %s9, [#allocation4], 256, 256, 16
    $region61: #{tpu_custom_call.1} parent=1 // pred_fallthru
      _
    // Predicated region
    $region62: #{tpu_custom_call.1} parent=1 // pred_check
      _
    $region63: #{tpu_custom_call.1} parent=1 // pred_check_branch
      %695 = sbr.rel (0) target = $region65
    $region64: #{tpu_custom_call.1} parent=1 // pred_region
      %696 = dma.done [#allocation4], 512
    $region65: #{tpu_custom_call.1} parent=1 // pred_fallthru
      _
    %697 = vsyncpa [#allocation3], 1
    %698 = vsyncpa [#allocation6], 1
    %699 = vsyncpa [#allocation9], 1
    %700 = vsyncpa [#allocation4], 1

</llo_original>
